<compile_context>
chip_gen: v6e
topology: v6e:2x2x1
jax: 0.10.0
libtpu: 0.0.40
codegen_flags: <defaults>
</compile_context>

<pallas_src>
import numpy as np
import jax
import jax.numpy as jnp
from jax import lax
from jax.experimental import pallas as pl
from jax.experimental.pallas import tpu as pltpu

REF_SIZE = 5000   # Gaussian prior reference sample count (DevNet convention)
LANE = 128


def _round_up(a, b):
    return (a + b - 1) // b * b


def _sad_kernel(x_ref, w1_ref, b1_ref, w2_ref, stats_ref, score_ref, dev_ref):
    """One TILE_N-row tile: score = relu(x@W1+b1)@W2 + b2 ; dev = (s-mu)*inv_std.

    x_ref:     (TILE_N, D)     f32   (VMEM, streamed per grid step)
    w1_ref:    (D, H)          bf16  (VMEM, resident)
    b1_ref:    (1, H)          f32   (VMEM, resident)
    w2_ref:    (1, H)          f32   (VMEM, resident; W2 stored transposed)
    stats_ref: (3,)            f32   (SMEM scalars: [b2, prior_mu, prior_inv_std])
    score_ref: (1, 1, TILE_N)  f32   lane-dense output block
    dev_ref:   (1, 1, TILE_N)  f32   lane-dense output block
    """
    # In-kernel bf16 cast (VPU) -> MXU matmul with f32 accumulation.  The cast
    # here avoids any extra HBM pass over x in the wrapper.
    x_bf16 = x_ref[...].astype(jnp.bfloat16)
    h = jnp.dot(x_bf16, w1_ref[...],
                preferred_element_type=jnp.float32) + b1_ref[...]
    h = jnp.maximum(h, 0.0)                                   # (TILE_N, H) f32

    # Second stage as a mat-vec producing a lane-dense (1, TILE_N) row:
    #   s[0, n] = sum_k w2[0, k] * h[n, k]   (+ b2)
    s = lax.dot_general(
        w2_ref[...], h,
        dimension_numbers=(((1,), (1,)), ((), ())),
        preferred_element_type=jnp.float32) + stats_ref[0]    # (1, TILE_N)

    score_ref[...] = s[:, None, :]                            # (1, 1, TILE_N)
    # DevNet deviation against the precomputed N(0,1) prior statistics.
    dev_ref[...] = ((s - stats_ref[1]) * stats_ref[2])[:, None, :]


def init_params(key, node_feat_dim, hidden_dim):
    k1, k2, k3 = jax.random.split(key, 3)

    # Pad the hidden width to a multiple of 128 lanes; extra columns are zero
    # (zero weights + zero bias + zero w2 entries -> contribute exactly 0).
    h_pad = _round_up(hidden_dim, LANE)

    w1 = (jax.random.normal(k1, (node_feat_dim, hidden_dim), jnp.float32)
          / np.sqrt(node_feat_dim))
    w1 = jnp.zeros((node_feat_dim, h_pad), jnp.float32).at[:, :hidden_dim].set(w1)
    b1 = jnp.zeros((1, h_pad), jnp.float32)

    # W2 stored transposed as a (1, H) row (used as a mat-vec in the kernel).
    w2 = (jax.random.normal(k2, (1, hidden_dim), jnp.float32)
          / np.sqrt(hidden_dim))
    w2 = jnp.zeros((1, h_pad), jnp.float32).at[:, :hidden_dim].set(w2)
    b2 = jnp.zeros((), jnp.float32)

    # DevNet prior: 5000 N(0,1) reference scores.  Reduce ONCE here (unbiased
    # std, torch.std convention); only the scalars enter the kernel.
    prior = jax.random.normal(k3, (REF_SIZE,), jnp.float32)
    mu = jnp.mean(prior)
    var = jnp.sum((prior - mu) ** 2) / (REF_SIZE - 1)
    inv_std = lax.rsqrt(var)

    return dict(w1=w1, b1=b1, w2=w2, b2=b2,
                prior_mean=mu, prior_inv_std=inv_std)


def sad_forward(source_node_embedding, node_ts, labels, params, *,
                num_time_slots=4, tile_n=4096):
    del labels  # labels do not enter the scoring path
    x = jnp.asarray(source_node_embedding, jnp.float32)
    N, D = x.shape
    H = params["w1"].shape[1]   # already padded to a multiple of 128 at init

    # Row tile: multiple of 128 (lane-dense output rows), MiB-scale to amortize
    # per-grid-step overhead, no larger than the (128-rounded) problem size.
    tile = max(LANE, min(_round_up(tile_n, LANE), _round_up(N, LANE)))
    # v7x megacore: prefer >= 2 parallel tiles when there is enough work.
    if pl.cdiv(N, tile) == 1 and tile > LANE:
        tile = max(LANE, _round_up(pl.cdiv(tile, 2), LANE))
    n_tiles = pl.cdiv(N, tile)

    # Weights are tiny and resident; stream x directly in f32 (no pad/cast).
    w1 = params["w1"].astype(jnp.bfloat16)
    b1 = params["b1"].astype(jnp.float32)
    w2 = params["w2"].astype(jnp.float32)
    # SMEM scalars: [b2, prior_mean, prior_inv_std]
    stats = jnp.stack([params["b2"].astype(jnp.float32),
                       params["prior_mean"].astype(jnp.float32),
                       params["prior_inv_std"].astype(jnp.float32)])

    # VMEM budget: double-buffered x blocks dominate; clamp to 48 MiB (v7x-safe).
    d_lane = _round_up(D, LANE)
    est_vmem = (2 * tile * d_lane * 4                 # x blocks (f32, dbl-buffered)
                + 2 * _round_up(D, 16) * H * 2        # W1 (bf16, resident)
                + 4 * 8 * H * 4                       # b1, w2
                + 4 * 8 * tile * 4)                   # score/dev output blocks
    vmem_limit = int(min(max(32 << 20, 2 * est_vmem), 48 << 20))

    score_slab, dev_slab = pl.pallas_call(
        _sad_kernel,
        grid=(n_tiles,),
        out_shape=(jax.ShapeDtypeStruct((n_tiles, 1, tile), jnp.float32),
                   jax.ShapeDtypeStruct((n_tiles, 1, tile), jnp.float32)),
        in_specs=[
            pl.BlockSpec((tile, D), lambda i: (i, 0)),          # x: streamed f32
            pl.BlockSpec((D, H), lambda i: (0, 0)),             # W1: resident
            pl.BlockSpec((1, H), lambda i: (0, 0)),             # b1: resident
            pl.BlockSpec((1, H), lambda i: (0, 0)),             # W2^T: resident
            pl.BlockSpec(memory_space=pltpu.MemorySpace.SMEM),  # scalars
        ],
        out_specs=(pl.BlockSpec((1, 1, tile), lambda i: (i, 0, 0)),
                   pl.BlockSpec((1, 1, tile), lambda i: (i, 0, 0))),
        compiler_params=pltpu.CompilerParams(
            dimension_semantics=("parallel",),
            vmem_limit_bytes=vmem_limit),
    )(x, w1, b1, w2, stats)

    # Rows >= N in the last (ragged) block are unspecified; never reduce over
    # the padded slab -- slice to [:N] first.
    score = score_slab.reshape(-1)[:N]     # (N,)  anomaly scores
    dev = dev_slab.reshape(-1)[:N]         # (N,)  deviations

    # group: time-slot bucket index per node (gdn's time grouping equivalent).
    ts = jnp.asarray(node_ts, jnp.float32)
    ts_min, ts_max = ts.min(), ts.max()
    slot_len = (ts_max - ts_min) / num_time_slots + 1e-12
    group = jnp.clip(jnp.floor((ts - ts_min) / slot_len),
                     0, num_time_slots - 1).astype(jnp.int32)

    prediction_dict = {
        "anom_score": score[:, None],   # [N, 1], like gdn output
        "time": ts,                     # torch.from_numpy(node_ts) analogue
        "group": group,                 # [N] int32 time-slot group ids
        "dev": dev,                     # [N] deviation of squeezed scores
    }
    return prediction_dict


if __name__ == "__main__":
    key = jax.random.PRNGKey(0)
    kx, kt, kp = jax.random.split(key, 3)

    N, D, H = 16, 32, 64                      # nodes, node_feat_dim, hidden
    source_node_embedding = jax.random.normal(kx, (N, D), jnp.float32)
    node_ts = np.asarray(
        jax.random.uniform(kt, (N,), jnp.float32, 0.0, 100.0))
    labels = np.zeros((N,), dtype=np.int64)

    params = init_params(kp, D, H)
    out = sad_forward(source_node_embedding, node_ts, labels, params)
    jax.tree_util.tree_map(jax.block_until_ready, out)

    assert out["anom_score"].shape == (N, 1)
    assert out["dev"].shape == (N,)
    assert out["group"].shape == (N,)
    assert out["time"].shape == (N,)
    assert np.all(np.isfinite(np.asarray(out["anom_score"])))
    assert np.all(np.isfinite(np.asarray(out["dev"])))
    print("KERNEL_OK")
</pallas_src>

<mosaic_0001>
module attributes {stable_mosaic.version = 11 : i64} {
  func.func @_sad_kernel(%arg0: i32, %arg1: memref<128x32xf32, #tpu.memory_space<vmem>>, %arg2: memref<32x128xbf16, #tpu.memory_space<vmem>>, %arg3: memref<1x128xf32, #tpu.memory_space<vmem>>, %arg4: memref<1x128xf32, #tpu.memory_space<vmem>>, %arg5: memref<3xf32, #tpu.memory_space<smem>>, %arg6: memref<1x1x128xf32, #tpu.memory_space<vmem>>, %arg7: memref<1x1x128xf32, #tpu.memory_space<vmem>>) attributes {dimension_semantics = [#tpu.dimension_semantics<parallel>], iteration_bounds = array<i64: 1>, scalar_prefetch = 0 : i64, scratch_operands = 0 : i64, tpu.core_type = #tpu.core_type<tc>, window_params = [{transform_indices = @transform_0, window_bounds = array<i64: 128, 32>}, {pipeline_mode = #tpu.pipeline_mode<synchronous>, transform_indices = @transform_1, window_bounds = array<i64: 32, 128>}, {pipeline_mode = #tpu.pipeline_mode<synchronous>, transform_indices = @transform_2, window_bounds = array<i64: 1, 128>}, {pipeline_mode = #tpu.pipeline_mode<synchronous>, transform_indices = @transform_3, window_bounds = array<i64: 1, 128>}, {transform_indices = @transform_4, window_bounds = array<i64: 3>}, {transform_indices = @transform_5, window_bounds = array<i64: 1, 1, 128>}, {transform_indices = @transform_6, window_bounds = array<i64: 1, 1, 128>}]} {
    %c0 = arith.constant 0 : index
    %c0_0 = arith.constant 0 : index
    %0 = vector.load %arg1[%c0, %c0_0] : memref<128x32xf32, #tpu.memory_space<vmem>>, vector<128x32xf32>
    %1 = arith.truncf %0 : vector<128x32xf32> to vector<128x32xbf16>
    %c0_1 = arith.constant 0 : index
    %c0_2 = arith.constant 0 : index
    %2 = vector.load %arg2[%c0_1, %c0_2] : memref<32x128xbf16, #tpu.memory_space<vmem>>, vector<32x128xbf16>
    %cst = arith.constant dense<0.000000e+00> : vector<128x128xf32>
    %3 = tpu.matmul %1, %2, %cst {dimension_numbers = #tpu.dot_dimension_numbers<[1], [0], [0], [1], [0, 0, 1, 1], [], []>} : vector<128x32xbf16>, vector<32x128xbf16>, vector<128x128xf32> -> vector<128x128xf32>
    %c0_3 = arith.constant 0 : index
    %c0_4 = arith.constant 0 : index
    %4 = vector.load %arg3[%c0_3, %c0_4] : memref<1x128xf32, #tpu.memory_space<vmem>>, vector<1x128xf32>
    %5 = vector.broadcast %4 : vector<1x128xf32> to vector<128x128xf32>
    %6 = arith.addf %3, %5 : vector<128x128xf32>
    %cst_5 = arith.constant 0.000000e+00 : f32
    %7 = vector.broadcast %cst_5 : f32 to vector<128x128xf32>
    %8 = arith.maximumf %6, %7 : vector<128x128xf32>
    %c0_6 = arith.constant 0 : index
    %c0_7 = arith.constant 0 : index
    %9 = vector.load %arg4[%c0_6, %c0_7] : memref<1x128xf32, #tpu.memory_space<vmem>>, vector<1x128xf32>
    %cst_8 = arith.constant dense<0.000000e+00> : vector<1x128xf32>
    %10 = tpu.matmul %9, %8, %cst_8 {dimension_numbers = #tpu.dot_dimension_numbers<[1], [1], [0], [0], [0, 0, 1, 0], [], []>} : vector<1x128xf32>, vector<128x128xf32>, vector<1x128xf32> -> vector<1x128xf32>
    %c0_9 = arith.constant 0 : index
    %11 = memref.load %arg5[%c0_9] : memref<3xf32, #tpu.memory_space<smem>>
    %12 = vector.broadcast %11 : f32 to vector<1x128xf32>
    %13 = arith.addf %10, %12 : vector<1x128xf32>
    %14 = vector.shape_cast %13 : vector<1x128xf32> to vector<1x1x128xf32>
    %c0_10 = arith.constant 0 : index
    %c0_11 = arith.constant 0 : index
    %c0_12 = arith.constant 0 : index
    %15 = vector.load %arg6[%c0_10, %c0_11, %c0_12] : memref<1x1x128xf32, #tpu.memory_space<vmem>>, vector<1x1x128xf32>
    tpu.vector_store %arg6[%c0_10, %c0_11, %c0_12], %14 {strides = array<i32>} : memref<1x1x128xf32, #tpu.memory_space<vmem>>, vector<1x1x128xf32>,
    %c1 = arith.constant 1 : index
    %16 = memref.load %arg5[%c1] : memref<3xf32, #tpu.memory_space<smem>>
    %17 = vector.broadcast %16 : f32 to vector<1x128xf32>
    %18 = arith.subf %13, %17 : vector<1x128xf32>
    %c2 = arith.constant 2 : index
    %19 = memref.load %arg5[%c2] : memref<3xf32, #tpu.memory_space<smem>>
    %20 = vector.broadcast %19 : f32 to vector<1x128xf32>
    %21 = arith.mulf %18, %20 : vector<1x128xf32>
    %22 = vector.shape_cast %21 : vector<1x128xf32> to vector<1x1x128xf32>
    %c0_13 = arith.constant 0 : index
    %c0_14 = arith.constant 0 : index
    %c0_15 = arith.constant 0 : index
    %23 = vector.load %arg7[%c0_13, %c0_14, %c0_15] : memref<1x1x128xf32, #tpu.memory_space<vmem>>, vector<1x1x128xf32>
    tpu.vector_store %arg7[%c0_13, %c0_14, %c0_15], %22 {strides = array<i32>} : memref<1x1x128xf32, #tpu.memory_space<vmem>>, vector<1x1x128xf32>,
    return
  }
  func.func @transform_0(%arg0: i32) -> (i32, i32) {
    %c0_i32 = arith.constant 0 : i32
    %c0_i32_0 = arith.constant 0 : i32
    return %arg0, %c0_i32 : i32, i32
  }
  func.func @transform_1(%arg0: i32) -> (i32, i32) {
    %c0_i32 = arith.constant 0 : i32
    %c0_i32_0 = arith.constant 0 : i32
    %c0_i32_1 = arith.constant 0 : i32
    return %c0_i32, %c0_i32_0 : i32, i32
  }
  func.func @transform_2(%arg0: i32) -> (i32, i32) {
    %c0_i32 = arith.constant 0 : i32
    %c0_i32_0 = arith.constant 0 : i32
    %c0_i32_1 = arith.constant 0 : i32
    return %c0_i32, %c0_i32_0 : i32, i32
  }
  func.func @transform_3(%arg0: i32) -> (i32, i32) {
    %c0_i32 = arith.constant 0 : i32
    %c0_i32_0 = arith.constant 0 : i32
    %c0_i32_1 = arith.constant 0 : i32
    return %c0_i32, %c0_i32_0 : i32, i32
  }
  func.func @transform_4(%arg0: i32) -> i32 {
    %c0_i32 = arith.constant 0 : i32
    %c0_i32_0 = arith.constant 0 : i32
    return %c0_i32 : i32
  }
  func.func @transform_5(%arg0: i32) -> (i32, i32, i32) {
    %c0_i32 = arith.constant 0 : i32
    %c0_i32_0 = arith.constant 0 : i32
    %c0_i32_1 = arith.constant 0 : i32
    return %arg0, %c0_i32, %c0_i32_0 : i32, i32, i32
  }
  func.func @transform_6(%arg0: i32) -> (i32, i32, i32) {
    %c0_i32 = arith.constant 0 : i32
    %c0_i32_0 = arith.constant 0 : i32
    %c0_i32_1 = arith.constant 0 : i32
    return %arg0, %c0_i32, %c0_i32_0 : i32, i32, i32
  }
}

</mosaic_0001>

<llo_original>
// kernel: tpu_custom_call.1
$region0: #{tpu_custom_call.1}
  #allocation0 [shape = 'u32[]', space=smem, size = 0x4, offset = 0x4, fixed_abs, tag = 'smem constant byte address 0x4 - core index']
  #allocation1 [shape = 'u32[144,128]{1,0:T(1,128)}', space=vmem, size = 0x12000, scoped, tag = 'internal scratch']
  %s0 = inlined_call_operand.hbm [shape: f32[16,32], index: 0, kind: input, shape index: {}]
  %s1 = inlined_call_operand.hbm [shape: bf16[32,128], index: 1, kind: input, shape index: {}]
  %s2 = inlined_call_operand.vmem [shape: f32[1,128], index: 2, kind: input, shape index: {}]
  %s3 = inlined_call_operand.vmem [shape: f32[1,128], index: 3, kind: input, shape index: {}]
  %s4 = inlined_call_operand.vmem [shape: f32[3], index: 4, kind: input, shape index: {}]
  %s5 = inlined_call_operand.hbm [shape: f32[1,1,128], index: 5, kind: output, shape index: {0}]
  %s6 = inlined_call_operand.hbm [shape: f32[1,1,128], index: 6, kind: output, shape index: {1}]
  %7 = xla_tuple %s5, %s6
  %s8 = sld [smem:[#allocation0]]
  $region50: #{tpu_custom_call.1} parent=0
    _
  %s10 = ssub.s32 1, %s8
  %s11 = scalar_select 0, %s10, %s8
  $region1: #{tpu_custom_call.1} parent=0
    #allocation2 [shape = 'u8[65536]{0}', space=vmem, size = 0x10000, scoped, tag = 'input window, operand 0, single buffered']
    #allocation3 [shape = 's32[1]{0}', space=sflag, size = 0x4, scoped, tag = 'scoped memory for tpu_custom_call.1']
    #allocation4 [shape = 's32[1]{0}', space=sflag, size = 0x4, scoped, tag = 'scoped memory for tpu_custom_call.1']
    #allocation5 [shape = 's32[1]{0}', space=sflag, size = 0x4, scoped, tag = 'scoped memory for tpu_custom_call.1']
    #allocation6 [shape = 'u8[8192]{0}', space=vmem, size = 0x2000, scoped, tag = 'input window, operand 1, single buffered']
    #allocation7 [shape = 's32[1]{0}', space=sflag, size = 0x4, scoped, tag = 'scoped memory for tpu_custom_call.1']
    #allocation8 [shape = 'u8[512]{0}', space=smem, size = 0x200, scoped, tag = 'input window, operand 4, single buffered']
    #allocation9 [shape = 'u8[512]{0}', space=vmem, size = 0x400, scoped, tag = 'output window, operand 0, single buffered']
    #allocation10 [shape = 'u8[512]{0}', space=vmem, size = 0x400, scoped, tag = 'output window, operand 1, single buffered']
    #allocation11 [shape = 's32[1]{0}', space=sflag, size = 0x4, scoped, tag = 'scoped memory for tpu_custom_call.1']
    %12 = vsyncpa [#allocation3], 0
    %13 = vsyncpa [#allocation7], 0
    %14 = vsyncpa [#allocation5], 0
    %15 = vsyncpa [#allocation4], 0
    %16 = vsyncpa [#allocation11], 0
    // Predicated region
    $region2: #{tpu_custom_call.1} parent=1 // pred_check
      _
    $region3: #{tpu_custom_call.1} parent=1 // pred_check_branch
      %18 = sbr.rel (0) target = $region5
    $region4: #{tpu_custom_call.1} parent=1 // pred_region
      %s20 = ssub.s32 2048, 256
      %21 = vsyncadd [#allocation3], %s20
      %s22 = sshll.u32 [#allocation2], 4
      %s23 = int_to_ptr.vmem [resolvable:$true] %s22
      %28 = dma.hbm_to_vmem [thread:$0]  %s0, 256, %s23, [#allocation3], 128, 128, 8
    $region5: #{tpu_custom_call.1} parent=1 // pred_fallthru
      _
    // Predicated region
    $region6: #{tpu_custom_call.1} parent=1 // pred_check
      _
    $region7: #{tpu_custom_call.1} parent=1 // pred_check_branch
      %30 = sbr.rel (0) target = $region9
    $region8: #{tpu_custom_call.1} parent=1 // pred_region
      %s32 = ssub.s32 256, 256
      %33 = vsyncadd [#allocation7], %s32
      %s34 = sshll.u32 [#allocation6], 4
      %s35 = int_to_ptr.vmem [resolvable:$true] %s34
      %40 = dma.hbm_to_vmem [thread:$0]  %s1, 256, %s35, [#allocation7], 64, 64, 4
    $region9: #{tpu_custom_call.1} parent=1 // pred_fallthru
      _
    // Predicated region
    $region10: #{tpu_custom_call.1} parent=1 // pred_check
      _
    $region11: #{tpu_custom_call.1} parent=1 // pred_check_branch
      %42 = sbr.rel (0) target = $region13
    $region12: #{tpu_custom_call.1} parent=1 // pred_region
      _
    $region13: #{tpu_custom_call.1} parent=1 // pred_fallthru
      _
    // Predicated region
    $region14: #{tpu_custom_call.1} parent=1 // pred_check
      _
    $region15: #{tpu_custom_call.1} parent=1 // pred_check_branch
      %44 = sbr.rel (0) target = $region17
    $region16: #{tpu_custom_call.1} parent=1 // pred_region
      _
    $region17: #{tpu_custom_call.1} parent=1 // pred_fallthru
      _
    // Predicated region
    $region18: #{tpu_custom_call.1} parent=1 // pred_check
      _
    $region19: #{tpu_custom_call.1} parent=1 // pred_check_branch
      %46 = sbr.rel (0) target = $region21
    $region20: #{tpu_custom_call.1} parent=1 // pred_region
      %s48 = ssub.s32 16, 16
      %49 = vsyncadd [#allocation5], %s48
      %s51 = sshll.u32 %s4, 4
      %s52 = int_to_ptr.vmem [resolvable:$true] %s51
      %54 = dma.vmem_to_smem %s52, 16, [#allocation8], [#allocation5]
    $region21: #{tpu_custom_call.1} parent=1 // pred_fallthru
      _
    // Predicated region
    $region22: #{tpu_custom_call.1} parent=1 // pred_check
      _
    $region23: #{tpu_custom_call.1} parent=1 // pred_check_branch
      %56 = sbr.rel (0) target = $region25
    $region24: #{tpu_custom_call.1} parent=1 // pred_region
      %57 = dma.done [#allocation3], 2048
    $region25: #{tpu_custom_call.1} parent=1 // pred_fallthru
      _
    // Predicated region
    $region26: #{tpu_custom_call.1} parent=1 // pred_check
      _
    $region27: #{tpu_custom_call.1} parent=1 // pred_check_branch
      %59 = sbr.rel (0) target = $region29
    $region28: #{tpu_custom_call.1} parent=1 // pred_region
      %60 = dma.done [#allocation7], 256
    $region29: #{tpu_custom_call.1} parent=1 // pred_fallthru
      _
    // Predicated region
    $region30: #{tpu_custom_call.1} parent=1 // pred_check
      _
    $region31: #{tpu_custom_call.1} parent=1 // pred_check_branch
      %62 = sbr.rel (0) target = $region33
    $region32: #{tpu_custom_call.1} parent=1 // pred_region
      %63 = dma.done [#allocation5], 16
    $region33: #{tpu_custom_call.1} parent=1 // pred_fallthru
      _
    %64 = sfence
    %v66 = vld [vmem:[#allocation2] sm:$0xff]
    %v67 = vld [vmem:[#allocation2 + $0x8] sm:$0xff]
    %v68 = vld [vmem:[#allocation2 + $0x10] sm:$0xff]
    %v69 = vld [vmem:[#allocation2 + $0x18] sm:$0xff]
    %v70 = vld [vmem:[#allocation2 + $0x20] sm:$0xff]
    %v71 = vld [vmem:[#allocation2 + $0x28] sm:$0xff]
    %v72 = vld [vmem:[#allocation2 + $0x30] sm:$0xff]
    %v73 = vld [vmem:[#allocation2 + $0x38] sm:$0xff]
    %v74 = vld [vmem:[#allocation2 + $0x40] sm:$0xff]
    %v75 = vld [vmem:[#allocation2 + $0x48] sm:$0xff]
    %v76 = vld [vmem:[#allocation2 + $0x50] sm:$0xff]
    %v77 = vld [vmem:[#allocation2 + $0x58] sm:$0xff]
    %v78 = vld [vmem:[#allocation2 + $0x60] sm:$0xff]
    %v79 = vld [vmem:[#allocation2 + $0x68] sm:$0xff]
    %v80 = vld [vmem:[#allocation2 + $0x70] sm:$0xff]
    %v81 = vld [vmem:[#allocation2 + $0x78] sm:$0xff]
    %v82 = vpack.c.bf16 %v67, %v66
    %v83 = vpack.c.bf16 %v69, %v68
    %v84 = vpack.c.bf16 %v71, %v70
    %v85 = vpack.c.bf16 %v73, %v72
    %v86 = vpack.c.bf16 %v75, %v74
    %v87 = vpack.c.bf16 %v77, %v76
    %v88 = vpack.c.bf16 %v79, %v78
    %v89 = vpack.c.bf16 %v81, %v80
    %v90 = vld [vmem:[#allocation6] sm:$0xf]
    %v91 = vld [vmem:[#allocation6 + $0x4] sm:$0xf]
    %v92 = vld [vmem:[#allocation6 + $0x8] sm:$0xf]
    %v93 = vld [vmem:[#allocation6 + $0xc] sm:$0xf]
    %v94 = vld [vmem:[%s2] sm:$0x1]
    %v96 = vlaneseq
    %v97 = vshrl.u32 %v96, 7
    %v98 = vsub.s32 0, %v97
    %v99 = vrot.slane %v94, %v98
    %v105 = vunpack.c.l.b16 %v90
    %v106 = vunpack.c.l.b16 %v91
    %v107 = vunpack.c.l.b16 %v92
    %v108 = vunpack.c.l.b16 %v93
    %v109 = vpack.c.b16 %v106, %v105
    %v110 = vpack.c.b16 %v108, %v107
    %vm113 = vcmask 261120
    %v115 = vsel %vm113, %v82, 0
    %v118 = vsel %vm113, %v83, 0
    %v121 = vsel %vm113, %v84, 0
    %v124 = vsel %vm113, %v85, 0
    %v127 = vsel %vm113, %v86, 0
    %v130 = vsel %vm113, %v87, 0
    %v133 = vsel %vm113, %v88, 0
    %v136 = vsel %vm113, %v89, 0
    %138 = vmatprep.subr.bf16.mxu0 0
    %139 = vmatpush1.bf16.msra.mxu0 0
    %140 = vmatprep.subr.bf16.mxu0 0
    %141 = vmatpush1.bf16.msra.mxu0 0
    %142 = vmatprep.subr.bf16.mxu0 0
    %143 = vmatpush1.bf16.msra.mxu0 0
    %144 = vmatprep.subr.bf16.mxu0 0
    %145 = vmatpush1.bf16.msra.mxu0 0
    %146 = vmatprep.subr.bf16.mxu0 0
    %147 = vmatpush1.bf16.msra.mxu0 0
    %148 = vmatprep.subr.bf16.mxu0 0
    %149 = vmatpush1.bf16.msra.mxu0 0
    %150 = vmatprep.subr.bf16.mxu0 0
    %151 = vmatpush1.bf16.msra.mxu0 %v110
    %152 = vmatprep.subr.bf16.mxu0 0
    %153 = vmatpush1.bf16.msra.mxu0 %v109
    %154 = vmatprep.subr.bf16.mxu0 0
    %155 = vmatpush2.bf16.msra.mxu0 0
    %156 = vmatprep.subr.bf16.mxu0 0
    %157 = vmatpush2.bf16.msra.mxu0 0
    %158 = vmatprep.subr.bf16.mxu0 0
    %159 = vmatpush2.bf16.msra.mxu0 0
    %160 = vmatprep.subr.bf16.mxu0 0
    %161 = vmatpush2.bf16.msra.mxu0 0
    %162 = vmatprep.subr.bf16.mxu0 0
    %163 = vmatpush2.bf16.msra.mxu0 0
    %164 = vmatprep.subr.bf16.mxu0 0
    %165 = vmatpush2.bf16.msra.mxu0 0
    %166 = vmatprep.subr.bf16.mxu0 0
    %167 = vmatpush2.bf16.msra.mxu0 0
    %168 = vmatprep.subr.bf16.mxu0 0
    %169 = vmatpush2.bf16.msra.mxu0 0
    %170 = vmatprep.mubr.bf16.mxu0 0
    %171 = vmatmul.mubr.bf16.gmra.mxu0 %v115
    %v172 = vpop.f32.mrf.mxu0
    %v173 = vadd.f32 %v99, %v172
    %v174 = vpop.f32.mrf.mxu0
    %v175 = vpop.f32.mrf.mxu0
    %v176 = vadd.f32 %v99, %v175
    %v177 = vpop.f32.mrf.mxu0
    %178 = vmatprep.mubr.bf16.mxu0 0
    %179 = vmatmul.mubr.bf16.gmra.mxu0 %v118
    %v180 = vpop.f32.mrf.mxu0
    %v181 = vadd.f32 %v99, %v180
    %v182 = vpop.f32.mrf.mxu0
    %v183 = vpop.f32.mrf.mxu0
    %v184 = vadd.f32 %v99, %v183
    %v185 = vpop.f32.mrf.mxu0
    %186 = vmatprep.mubr.bf16.mxu0 0
    %187 = vmatmul.mubr.bf16.gmra.mxu0 %v121
    %v188 = vpop.f32.mrf.mxu0
    %v189 = vadd.f32 %v99, %v188
    %v190 = vpop.f32.mrf.mxu0
    %v191 = vpop.f32.mrf.mxu0
    %v192 = vadd.f32 %v99, %v191
    %v193 = vpop.f32.mrf.mxu0
    %194 = vmatprep.mubr.bf16.mxu0 0
    %195 = vmatmul.mubr.bf16.gmra.mxu0 %v124
    %v196 = vpop.f32.mrf.mxu0
    %v197 = vadd.f32 %v99, %v196
    %v198 = vpop.f32.mrf.mxu0
    %v199 = vpop.f32.mrf.mxu0
    %v200 = vadd.f32 %v99, %v199
    %v201 = vpop.f32.mrf.mxu0
    %202 = vmatprep.mubr.bf16.mxu0 0
    %203 = vmatmul.mubr.bf16.gmra.mxu0 %v127
    %v204 = vpop.f32.mrf.mxu0
    %v205 = vadd.f32 %v99, %v204
    %v206 = vpop.f32.mrf.mxu0
    %v207 = vpop.f32.mrf.mxu0
    %v208 = vadd.f32 %v99, %v207
    %v209 = vpop.f32.mrf.mxu0
    %210 = vmatprep.mubr.bf16.mxu0 0
    %211 = vmatmul.mubr.bf16.gmra.mxu0 %v130
    %v212 = vpop.f32.mrf.mxu0
    %v213 = vadd.f32 %v99, %v212
    %v214 = vpop.f32.mrf.mxu0
    %v215 = vpop.f32.mrf.mxu0
    %v216 = vadd.f32 %v99, %v215
    %v217 = vpop.f32.mrf.mxu0
    %218 = vmatprep.mubr.bf16.mxu0 0
    %219 = vmatmul.mubr.bf16.gmra.mxu0 %v133
    %v220 = vpop.f32.mrf.mxu0
    %v221 = vadd.f32 %v99, %v220
    %v222 = vpop.f32.mrf.mxu0
    %v223 = vpop.f32.mrf.mxu0
    %v224 = vadd.f32 %v99, %v223
    %v225 = vpop.f32.mrf.mxu0
    %226 = vmatprep.mubr.bf16.mxu0 0
    %227 = vmatmul.mubr.bf16.gmra.mxu0 %v136
    %v228 = vpop.f32.mrf.mxu0
    %v229 = vadd.f32 %v99, %v228
    %v230 = vpop.f32.mrf.mxu0
    %v231 = vpop.f32.mrf.mxu0
    %v232 = vadd.f32 %v99, %v231
    %v233 = vpop.f32.mrf.mxu0
    %234 = vdwg.mxu0
    %v235 = vmax.f32 %v173, 0.0
    %v236 = vmax.f32 %v176, 0.0
    %v237 = vmax.f32 %v181, 0.0
    %v238 = vmax.f32 %v184, 0.0
    %v239 = vmax.f32 %v189, 0.0
    %v240 = vmax.f32 %v192, 0.0
    %v241 = vmax.f32 %v197, 0.0
    %v242 = vmax.f32 %v200, 0.0
    %v243 = vmax.f32 %v205, 0.0
    %v244 = vmax.f32 %v208, 0.0
    %v245 = vmax.f32 %v213, 0.0
    %v246 = vmax.f32 %v216, 0.0
    %v247 = vmax.f32 %v221, 0.0
    %v248 = vmax.f32 %v224, 0.0
    %v249 = vmax.f32 %v229, 0.0
    %v250 = vmax.f32 %v232, 0.0
    %v251 = vld [vmem:[%s3] sm:$0x1]
    %s252 = sld [smem:[#allocation8]]
    %v253 = vstv %s252
    %254 = vmatprep.subr.mxu0 0.0
    %255 = vmatpush1.xpose.msra.mxu0 %v250
    %256 = vmatprep.subr.mxu0 0.0
    %257 = vmatpush1.xpose.msra.mxu0 %v249
    %258 = vmatprep.subr.mxu0 0.0
    %259 = vmatpush1.xpose.msra.mxu0 %v248
    %260 = vmatprep.subr.mxu0 0.0
    %261 = vmatpush1.xpose.msra.mxu0 %v247
    %262 = vmatprep.subr.mxu0 0.0
    %263 = vmatpush1.xpose.msra.mxu0 %v246
    %264 = vmatprep.subr.mxu0 0.0
    %265 = vmatpush1.xpose.msra.mxu0 %v245
    %266 = vmatprep.subr.mxu0 0.0
    %267 = vmatpush1.xpose.msra.mxu0 %v244
    %268 = vmatprep.subr.mxu0 0.0
    %269 = vmatpush1.xpose.msra.mxu0 %v243
    %270 = vmatprep.subr.mxu0 0.0
    %271 = vmatpush1.xpose.msra.mxu0 %v242
    %272 = vmatprep.subr.mxu0 0.0
    %273 = vmatpush1.xpose.msra.mxu0 %v241
    %274 = vmatprep.subr.mxu0 0.0
    %275 = vmatpush1.xpose.msra.mxu0 %v240
    %276 = vmatprep.subr.mxu0 0.0
    %277 = vmatpush1.xpose.msra.mxu0 %v239
    %278 = vmatprep.subr.mxu0 0.0
    %279 = vmatpush1.xpose.msra.mxu0 %v238
    %280 = vmatprep.subr.mxu0 0.0
    %281 = vmatpush1.xpose.msra.mxu0 %v237
    %282 = vmatprep.subr.mxu0 0.0
    %283 = vmatpush1.xpose.msra.mxu0 %v236
    %284 = vmatprep.subr.mxu0 0.0
    %285 = vmatpush1.xpose.msra.mxu0 %v235
    %286 = vmatprep.subr.mxu0 0.0
    %287 = vmatpush2.xpose.msra.mxu0 0.0
    %288 = vmatprep.subr.mxu0 0.0
    %289 = vmatpush2.xpose.msra.mxu0 0.0
    %290 = vmatprep.subr.mxu0 0.0
    %291 = vmatpush2.xpose.msra.mxu0 0.0
    %292 = vmatprep.subr.mxu0 0.0
    %293 = vmatpush2.xpose.msra.mxu0 0.0
    %294 = vmatprep.subr.mxu0 0.0
    %295 = vmatpush2.xpose.msra.mxu0 0.0
    %296 = vmatprep.subr.mxu0 0.0
    %297 = vmatpush2.xpose.msra.mxu0 0.0
    %298 = vmatprep.subr.mxu0 0.0
    %299 = vmatpush2.xpose.msra.mxu0 0.0
    %300 = vmatprep.subr.mxu0 0.0
    %301 = vmatpush2.xpose.msra.mxu0 0.0
    %302 = vmatprep.subr.mxu0 0.0
    %303 = vmatpush2.xpose.msra.mxu0 0.0
    %304 = vmatprep.subr.mxu0 0.0
    %305 = vmatpush2.xpose.msra.mxu0 0.0
    %306 = vmatprep.subr.mxu0 0.0
    %307 = vmatpush2.xpose.msra.mxu0 0.0
    %308 = vmatprep.subr.mxu0 0.0
    %309 = vmatpush2.xpose.msra.mxu0 0.0
    %310 = vmatprep.subr.mxu0 0.0
    %311 = vmatpush2.xpose.msra.mxu0 0.0
    %312 = vmatprep.subr.mxu0 0.0
    %313 = vmatpush2.xpose.msra.mxu0 0.0
    %314 = vmatprep.subr.mxu0 0.0
    %315 = vmatpush2.xpose.msra.mxu0 0.0
    %316 = vmatprep.subr.mxu0 0.0
    %317 = vmatpush2.xpose.msra.mxu0 0.0
    %318 = vmatprep.mubr.f32.mxu0 0.0
    %319 = vmatmul.mubr.f32.gmra.mxu0 %v251
    %v320 = vpop.f32.mrf.mxu0
    %v321 = vadd.f32 %v253, %v320
    %v322 = vpop.f32.mrf.mxu0
    %323 = vdwg.mxu0
    %324 = vst [vmem:[#allocation9] sm:$0x1] %v321
    %s325 = sld [smem:[#allocation8 + $0x1]]
    %v326 = vstv %s325
    %v327 = vsub.f32 %v321, %v326
    %s328 = sld [smem:[#allocation8 + $0x2]]
    %v329 = vstv %s328
    %v330 = vmul.f32 %v327, %v329
    %331 = vst [vmem:[#allocation10] sm:$0x1] %v330
    // Predicated region
    $region34: #{tpu_custom_call.1} parent=1 // pred_check
      _
    $region35: #{tpu_custom_call.1} parent=1 // pred_check_branch
      %333 = sbr.rel (0) target = $region37
    $region36: #{tpu_custom_call.1} parent=1 // pred_region
      %s335 = ssub.s32 16, 16
      %336 = vsyncadd [#allocation4], %s335
      %s338 = sshll.u32 [#allocation9], 4
      %s339 = int_to_ptr.vmem [resolvable:$true] %s338
      %341 = dma.vmem_to_hbm [thread:$0]  %s339, 16, %s5, [#allocation4]
    $region37: #{tpu_custom_call.1} parent=1 // pred_fallthru
      _
    // Predicated region
    $region38: #{tpu_custom_call.1} parent=1 // pred_check
      _
    $region39: #{tpu_custom_call.1} parent=1 // pred_check_branch
      %343 = sbr.rel (0) target = $region41
    $region40: #{tpu_custom_call.1} parent=1 // pred_region
      %s345 = ssub.s32 16, 16
      %346 = vsyncadd [#allocation11], %s345
      %s348 = sshll.u32 [#allocation10], 4
      %s349 = int_to_ptr.vmem [resolvable:$true] %s348
      %351 = dma.vmem_to_hbm [thread:$0]  %s349, 16, %s6, [#allocation11]
    $region41: #{tpu_custom_call.1} parent=1 // pred_fallthru
      _
    // Predicated region
    $region42: #{tpu_custom_call.1} parent=1 // pred_check
      _
    $region43: #{tpu_custom_call.1} parent=1 // pred_check_branch
      %353 = sbr.rel (0) target = $region45
    $region44: #{tpu_custom_call.1} parent=1 // pred_region
      %354 = dma.done [#allocation4], 16
    $region45: #{tpu_custom_call.1} parent=1 // pred_fallthru
      _
    // Predicated region
    $region46: #{tpu_custom_call.1} parent=1 // pred_check
      _
    $region47: #{tpu_custom_call.1} parent=1 // pred_check_branch
      %356 = sbr.rel (0) target = $region49
    $region48: #{tpu_custom_call.1} parent=1 // pred_region
      %357 = dma.done [#allocation11], 16
    $region49: #{tpu_custom_call.1} parent=1 // pred_fallthru
      _
    %358 = vsyncpa [#allocation3], 1
    %359 = vsyncpa [#allocation7], 1
    %360 = vsyncpa [#allocation4], 1
    %361 = vsyncpa [#allocation11], 1
    %362 = vsyncpa [#allocation5], 1

</llo_original>
